<compile_context>
chip_gen: v7x
topology: tpu7x:2x2x1
jax: 0.10.0
libtpu: 0.0.40
codegen_flags: <defaults>
</compile_context>

<pallas_src>
import jax
import jax.numpy as jnp
from jax.experimental import pallas as pl
from jax.experimental.pallas import tpu as pltpu

LANE = 128  # lane-dense padding for the tiny class dimension


def gnn_kernel(a_ref, x_ref, p_ref, w1_ref, wstack_ref, wl2_ref, bstack_ref,
               out_ref):
    H = w1_ref.shape[1]
    cdt = w1_ref.dtype                      # MXU operand dtype (bf16 or f32)

    a = a_ref[...]                          # (M, M) block-diag normalized adjacency

    def gcn(h, w, brow):
        # GCNConv: A_hat @ (h @ W) + b, relu.  (dropout -> identity in eval)
        hw = jnp.dot(h, w, preferred_element_type=jnp.float32).astype(cdt)
        ah = jnp.dot(a, hw, preferred_element_type=jnp.float32)
        return jnp.maximum(ah + bstack_ref[brow:brow + 1, :H], 0.0).astype(cdt)

    h = gcn(x_ref[...], w1_ref[...], 0)     # conv1
    h = gcn(h, wstack_ref[0], 1)            # conv2
    h = gcn(h, wstack_ref[1], 2)            # conv3

    # global_mean_pool: block-diag P (Gm, M) with rows summing to 1 per graph
    g = jnp.dot(p_ref[...], h, preferred_element_type=jnp.float32).astype(cdt)

    # lin1 + relu   (dropout p=0.5 -> identity in eval)
    g = jnp.dot(g, wstack_ref[2], preferred_element_type=jnp.float32)
    g = jnp.maximum(g + bstack_ref[3:4, :H], 0.0).astype(cdt)

    # lin2 -> lane-dense (Gm, 128) output; valid classes live in [:, :C]
    out_ref[...] = (jnp.dot(g, wl2_ref[...], preferred_element_type=jnp.float32)
                    + bstack_ref[4:5, :])


def _block_diag(blocks):
    """(nb, Bc, r, c) -> (nb, Bc*r, Bc*c) block-diagonal per leading batch."""
    nb, bc, r, c = blocks.shape
    eye = jnp.eye(bc, dtype=blocks.dtype)
    out = jnp.einsum("ij,niab->niajb", eye, blocks)
    return out.reshape(nb, bc * r, bc * c)


def _auto_num_blocks(batch):
    # v7x has 2 TensorCores/chip -> 2 parallel fat blocks; single-TC chips
    # (v5e/v6e) amortize per-step overhead best with a single fat block.
    try:
        kind = jax.devices()[0].device_kind.lower()
    except Exception:
        kind = ""
    want = 2 if "7" in kind else 1
    return want if (batch % want == 0) else 1


def gnn_forward(a_hat, x, pool, params, *, num_blocks=None,
                compute_dtype=jnp.bfloat16):
    """Batched forward.

    a_hat: (B, N, N)  normalized adjacency per chunk
    x:     (B, N, F)  node features per chunk
    pool:  (B, G, N)  mean-pool matrix per chunk
    returns (B, G, num_classes), float32
    """
    (w1, b1, w2, b2, w3, b3, wl1, bl1, wl2, bl2) = params
    B, N, F = x.shape
    G = pool.shape[1]
    H = w1.shape[1]
    C = wl2.shape[1]

    if num_blocks is None:
        num_blocks = _auto_num_blocks(B)
    assert B % num_blocks == 0, "batch must divide evenly into fat blocks"
    Bc = B // num_blocks
    M = Bc * N          # rows of the merged (block-diagonal) matmul chain
    Gm = Bc * G         # pooled rows per fat block (full-sublane output tile)

    # ---- pad feature dim to a dense multiple (removes ragged rows) ----
    Fp = ((F + 31) // 32) * 32
    x_pad = jnp.zeros((B, N, Fp), jnp.float32).at[:, :, :F].set(x)
    w1_pad = jnp.zeros((Fp, H), jnp.float32).at[:F, :].set(w1)

    # ---- merge Bc chunks per grid step via block-diagonal A_hat / pool ----
    a_blk = _block_diag(a_hat.reshape(num_blocks, Bc, N, N))     # (nb, M, M)
    p_blk = _block_diag(pool.reshape(num_blocks, Bc, G, N))      # (nb, Gm, M)
    x_blk = x_pad.reshape(num_blocks, M, Fp)                     # (nb, M, Fp)

    # ---- pack the small weight/bias operands into grid-invariant slabs ----
    wstack = jnp.stack([w2, w3, wl1], axis=0)                        # (3, H, H)
    wl2_pad = jnp.zeros((H, LANE), jnp.float32).at[:, :C].set(wl2)   # (H, 128)
    bstack = jnp.zeros((5, LANE), jnp.float32)
    bstack = bstack.at[0, :H].set(b1.reshape(-1))
    bstack = bstack.at[1, :H].set(b2.reshape(-1))
    bstack = bstack.at[2, :H].set(b3.reshape(-1))
    bstack = bstack.at[3, :H].set(bl1.reshape(-1))
    bstack = bstack.at[4, :C].set(bl2.reshape(-1))

    # bf16 MXU operands, f32 accumulation (biases stay f32 on the accumulator).
    cdt = compute_dtype
    a_blk, x_blk, p_blk = (t.astype(cdt) for t in (a_blk, x_blk, p_blk))
    w1_pad, wstack, wl2_pad = (t.astype(cdt) for t in (w1_pad, wstack, wl2_pad))

    out_pad = pl.pallas_call(
        gnn_kernel,
        out_shape=jax.ShapeDtypeStruct((num_blocks, Gm, LANE), jnp.float32),
        grid=(num_blocks,),
        in_specs=[
            pl.BlockSpec((None, M, M), lambda b: (b, 0, 0)),    # block-diag A_hat
            pl.BlockSpec((None, M, Fp), lambda b: (b, 0, 0)),   # merged node feats
            pl.BlockSpec((None, Gm, M), lambda b: (b, 0, 0)),   # block-diag pool
            pl.BlockSpec((Fp, H), lambda b: (0, 0)),            # w1 (grid-invariant)
            pl.BlockSpec((3, H, H), lambda b: (0, 0, 0)),       # w2/w3/wl1 slab
            pl.BlockSpec((H, LANE), lambda b: (0, 0)),          # wl2 (lane-padded)
            pl.BlockSpec((5, LANE), lambda b: (0, 0)),          # bias slab (f32)
        ],
        out_specs=pl.BlockSpec((None, Gm, LANE), lambda b: (b, 0, 0)),
        compiler_params=pltpu.CompilerParams(
            dimension_semantics=("parallel",)),   # one fat block per TC on v7x
    )(a_blk, x_blk, p_blk, w1_pad, wstack, wl2_pad, bstack)

    # (nb, Bc*G, 128) -> (B, G, C); pad lanes are exact zeros and sliced off.
    return out_pad.reshape(B, G, LANE)[:, :, :C]


# ----------------------------- glue code (host) -----------------------------

def build_normalized_adjacency(edge_index, num_nodes):
    """Dense A_hat = D^{-1/2}(A + I)D^{-1/2} matching PyG gcn_norm."""
    src, dst = edge_index[0], edge_index[1]
    a = jnp.zeros((num_nodes, num_nodes), jnp.float32)
    # message flows source -> target: A[target, source] += 1 (sums multi-edges)
    a = a.at[dst, src].add(1.0)
    a = a + jnp.eye(num_nodes, dtype=jnp.float32)          # add self loops
    deg = a.sum(axis=1)
    dinv = jnp.where(deg > 0, 1.0 / jnp.sqrt(deg), 0.0)
    return dinv[:, None] * a * dinv[None, :]


def build_mean_pool_matrix(batch, num_graphs):
    """(G, N) matrix with P[g, n] = 1/|graph g| if batch[n] == g."""
    one_hot = (batch[None, :] == jnp.arange(num_graphs)[:, None]).astype(jnp.float32)
    counts = one_hot.sum(axis=1, keepdims=True)
    return one_hot / jnp.maximum(counts, 1.0)


def init_params(key, num_features, hidden_channels, num_classes):
    """Deterministic synthetic weights. All weight matrices stored as (in, out)."""
    ks = jax.random.split(key, 10)

    def w(k, shape, scale):
        return jax.random.normal(k, shape, jnp.float32) * scale

    H, F, C = hidden_channels, num_features, num_classes
    w1 = w(ks[0], (F, H), 1.0 / jnp.sqrt(F))
    b1 = jnp.zeros((1, H), jnp.float32)
    w2 = w(ks[1], (H, H), 1.0 / jnp.sqrt(H))
    b2 = w(ks[2], (1, H), 0.01)
    w3 = w(ks[3], (H, H), 1.0 / jnp.sqrt(H))
    b3 = w(ks[4], (1, H), 0.01)
    wl1 = w(ks[5], (H, H), 1.0 / jnp.sqrt(H))
    bl1 = w(ks[6], (1, H), 0.01)
    wl2 = w(ks[7], (H, C), 1.0 / jnp.sqrt(H))
    bl2 = w(ks[8], (1, C), 0.01)
    return (w1, b1, w2, b2, w3, b3, wl1, bl1, wl2, bl2)


def ref_forward(a_hat, x, pool, params):
    """Pure-JAX f32 reference (eval-mode PyTorch module semantics)."""
    (w1, b1, w2, b2, w3, b3, wl1, bl1, wl2, bl2) = params
    h = jnp.maximum(a_hat @ (x @ w1) + b1, 0.0)
    h = jnp.maximum(a_hat @ (h @ w2) + b2, 0.0)
    h = jnp.maximum(a_hat @ (h @ w3) + b3, 0.0)
    g = pool @ h
    g = jnp.maximum(g @ wl1 + bl1, 0.0)
    return g @ wl2 + bl2


if __name__ == "__main__":
    key = jax.random.PRNGKey(0)

    num_features = 20       # amino-acid one-hot features
    hidden_channels = 32
    num_classes = 1
    B = 8                   # mini-batch chunks (merged into 1-2 fat blocks)
    N = 16                  # nodes (residues) per chunk
    G = 2                   # graphs per chunk

    kx, kparams = jax.random.split(key)
    x = jax.random.normal(kx, (B, N, num_features), jnp.float32)

    # Two peptide "chain" graphs of 8 residues each, undirected chain edges
    # (same topology replicated across chunks for this synthetic example).
    src_list, dst_list = [], []
    for g in range(G):
        base = g * (N // G)
        for i in range(N // G - 1):
            src_list += [base + i, base + i + 1]
            dst_list += [base + i + 1, base + i]
    edge_index = jnp.array([src_list, dst_list], dtype=jnp.int32)       # (2, E)
    batch_vec = jnp.repeat(jnp.arange(G, dtype=jnp.int32), N // G)      # (N,)

    a_single = build_normalized_adjacency(edge_index, N)                # (N, N)
    p_single = build_mean_pool_matrix(batch_vec, G)                     # (G, N)
    a_hat = jnp.tile(a_single[None], (B, 1, 1))                         # (B, N, N)
    pool = jnp.tile(p_single[None], (B, 1, 1))                          # (B, G, N)

    params = init_params(kparams, num_features, hidden_channels, num_classes)

    # Fast path: bf16 MXU operands, f32 accumulation.
    out = gnn_forward(a_hat, x, pool, params)
    out = jax.block_until_ready(out)
    assert out.shape == (B, G, num_classes)
    assert out.dtype == jnp.float32

    ref = ref_forward(a_hat, x, pool, params)

    # Tight structural check: f32 kernel path vs f32 reference.
    out_f32 = jax.block_until_ready(
        gnn_forward(a_hat, x, pool, params, compute_dtype=jnp.float32))
    assert jnp.allclose(out_f32, ref, rtol=1e-4, atol=1e-4), "f32 mismatch vs ref"

    # Sanity check on the bf16 fast path (loose tol for bf16 operand rounding).
    assert jnp.allclose(out, ref, rtol=1e-1, atol=1e-1), "bf16 mismatch vs ref"

    print("KERNEL_OK")
</pallas_src>

<mosaic_0001>
module attributes {stable_mosaic.version = 11 : i64} {
  func.func @gnn_kernel(%arg0: i32, %arg1: memref<1x128x128xbf16, #tpu.memory_space<vmem>>, %arg2: memref<1x128x32xbf16, #tpu.memory_space<vmem>>, %arg3: memref<1x16x128xbf16, #tpu.memory_space<vmem>>, %arg4: memref<32x32xbf16, #tpu.memory_space<vmem>>, %arg5: memref<3x32x32xbf16, #tpu.memory_space<vmem>>, %arg6: memref<32x128xbf16, #tpu.memory_space<vmem>>, %arg7: memref<5x128xf32, #tpu.memory_space<vmem>>, %arg8: memref<1x16x128xf32, #tpu.memory_space<vmem>>) attributes {dimension_semantics = [#tpu.dimension_semantics<parallel>], iteration_bounds = array<i64: 1>, scalar_prefetch = 0 : i64, scratch_operands = 0 : i64, tpu.core_type = #tpu.core_type<tc>, window_params = [{transform_indices = @transform_0, window_bounds = array<i64: 1, 128, 128>}, {transform_indices = @transform_1, window_bounds = array<i64: 1, 128, 32>}, {transform_indices = @transform_2, window_bounds = array<i64: 1, 16, 128>}, {pipeline_mode = #tpu.pipeline_mode<synchronous>, transform_indices = @transform_3, window_bounds = array<i64: 32, 32>}, {pipeline_mode = #tpu.pipeline_mode<synchronous>, transform_indices = @transform_4, window_bounds = array<i64: 3, 32, 32>}, {pipeline_mode = #tpu.pipeline_mode<synchronous>, transform_indices = @transform_5, window_bounds = array<i64: 32, 128>}, {pipeline_mode = #tpu.pipeline_mode<synchronous>, transform_indices = @transform_6, window_bounds = array<i64: 5, 128>}, {transform_indices = @transform_7, window_bounds = array<i64: 1, 16, 128>}]} {
    %c0 = arith.constant 0 : index
    %c0_0 = arith.constant 0 : index
    %c0_1 = arith.constant 0 : index
    %0 = vector.load %arg1[%c0, %c0_0, %c0_1] : memref<1x128x128xbf16, #tpu.memory_space<vmem>>, vector<1x128x128xbf16>
    %1 = vector.shape_cast %0 : vector<1x128x128xbf16> to vector<128x128xbf16>
    %c0_2 = arith.constant 0 : index
    %c0_3 = arith.constant 0 : index
    %c0_4 = arith.constant 0 : index
    %2 = vector.load %arg2[%c0_2, %c0_3, %c0_4] : memref<1x128x32xbf16, #tpu.memory_space<vmem>>, vector<1x128x32xbf16>
    %3 = vector.shape_cast %2 : vector<1x128x32xbf16> to vector<128x32xbf16>
    %c0_5 = arith.constant 0 : index
    %c0_6 = arith.constant 0 : index
    %4 = vector.load %arg4[%c0_5, %c0_6] : memref<32x32xbf16, #tpu.memory_space<vmem>>, vector<32x32xbf16>
    %cst = arith.constant dense<0.000000e+00> : vector<128x32xf32>
    %5 = tpu.matmul %3, %4, %cst {dimension_numbers = #tpu.dot_dimension_numbers<[1], [0], [0], [1], [0, 0, 1, 1], [], []>} : vector<128x32xbf16>, vector<32x32xbf16>, vector<128x32xf32> -> vector<128x32xf32>
    %6 = arith.truncf %5 : vector<128x32xf32> to vector<128x32xbf16>
    %cst_7 = arith.constant dense<0.000000e+00> : vector<128x32xf32>
    %7 = tpu.matmul %1, %6, %cst_7 {dimension_numbers = #tpu.dot_dimension_numbers<[1], [0], [0], [1], [0, 0, 1, 1], [], []>} : vector<128x128xbf16>, vector<128x32xbf16>, vector<128x32xf32> -> vector<128x32xf32>
    %c0_8 = arith.constant 0 : index
    %c0_9 = arith.constant 0 : index
    %8 = vector.load %arg7[%c0_8, %c0_9] : memref<5x128xf32, #tpu.memory_space<vmem>>, vector<1x32xf32>
    %9 = vector.broadcast %8 : vector<1x32xf32> to vector<128x32xf32>
    %10 = arith.addf %7, %9 : vector<128x32xf32>
    %cst_10 = arith.constant 0.000000e+00 : f32
    %11 = vector.broadcast %cst_10 : f32 to vector<128x32xf32>
    %12 = arith.maximumf %10, %11 : vector<128x32xf32>
    %13 = arith.truncf %12 : vector<128x32xf32> to vector<128x32xbf16>
    %c0_11 = arith.constant 0 : index
    %c0_12 = arith.constant 0 : index
    %c0_13 = arith.constant 0 : index
    %14 = vector.load %arg5[%c0_11, %c0_12, %c0_13] : memref<3x32x32xbf16, #tpu.memory_space<vmem>>, vector<1x32x32xbf16>
    %15 = vector.shape_cast %14 : vector<1x32x32xbf16> to vector<32x32xbf16>
    %cst_14 = arith.constant dense<0.000000e+00> : vector<128x32xf32>
    %16 = tpu.matmul %13, %15, %cst_14 {dimension_numbers = #tpu.dot_dimension_numbers<[1], [0], [0], [1], [0, 0, 1, 1], [], []>} : vector<128x32xbf16>, vector<32x32xbf16>, vector<128x32xf32> -> vector<128x32xf32>
    %17 = arith.truncf %16 : vector<128x32xf32> to vector<128x32xbf16>
    %cst_15 = arith.constant dense<0.000000e+00> : vector<128x32xf32>
    %18 = tpu.matmul %1, %17, %cst_15 {dimension_numbers = #tpu.dot_dimension_numbers<[1], [0], [0], [1], [0, 0, 1, 1], [], []>} : vector<128x128xbf16>, vector<128x32xbf16>, vector<128x32xf32> -> vector<128x32xf32>
    %c1 = arith.constant 1 : index
    %c0_16 = arith.constant 0 : index
    %19 = vector.load %arg7[%c1, %c0_16] : memref<5x128xf32, #tpu.memory_space<vmem>>, vector<1x32xf32>
    %20 = vector.broadcast %19 : vector<1x32xf32> to vector<128x32xf32>
    %21 = arith.addf %18, %20 : vector<128x32xf32>
    %cst_17 = arith.constant 0.000000e+00 : f32
    %22 = vector.broadcast %cst_17 : f32 to vector<128x32xf32>
    %23 = arith.maximumf %21, %22 : vector<128x32xf32>
    %24 = arith.truncf %23 : vector<128x32xf32> to vector<128x32xbf16>
    %c1_18 = arith.constant 1 : index
    %c0_19 = arith.constant 0 : index
    %c0_20 = arith.constant 0 : index
    %25 = vector.load %arg5[%c1_18, %c0_19, %c0_20] : memref<3x32x32xbf16, #tpu.memory_space<vmem>>, vector<1x32x32xbf16>
    %26 = vector.shape_cast %25 : vector<1x32x32xbf16> to vector<32x32xbf16>
    %cst_21 = arith.constant dense<0.000000e+00> : vector<128x32xf32>
    %27 = tpu.matmul %24, %26, %cst_21 {dimension_numbers = #tpu.dot_dimension_numbers<[1], [0], [0], [1], [0, 0, 1, 1], [], []>} : vector<128x32xbf16>, vector<32x32xbf16>, vector<128x32xf32> -> vector<128x32xf32>
    %28 = arith.truncf %27 : vector<128x32xf32> to vector<128x32xbf16>
    %cst_22 = arith.constant dense<0.000000e+00> : vector<128x32xf32>
    %29 = tpu.matmul %1, %28, %cst_22 {dimension_numbers = #tpu.dot_dimension_numbers<[1], [0], [0], [1], [0, 0, 1, 1], [], []>} : vector<128x128xbf16>, vector<128x32xbf16>, vector<128x32xf32> -> vector<128x32xf32>
    %c2 = arith.constant 2 : index
    %c0_23 = arith.constant 0 : index
    %30 = vector.load %arg7[%c2, %c0_23] : memref<5x128xf32, #tpu.memory_space<vmem>>, vector<1x32xf32>
    %31 = vector.broadcast %30 : vector<1x32xf32> to vector<128x32xf32>
    %32 = arith.addf %29, %31 : vector<128x32xf32>
    %cst_24 = arith.constant 0.000000e+00 : f32
    %33 = vector.broadcast %cst_24 : f32 to vector<128x32xf32>
    %34 = arith.maximumf %32, %33 : vector<128x32xf32>
    %35 = arith.truncf %34 : vector<128x32xf32> to vector<128x32xbf16>
    %c0_25 = arith.constant 0 : index
    %c0_26 = arith.constant 0 : index
    %c0_27 = arith.constant 0 : index
    %36 = vector.load %arg3[%c0_25, %c0_26, %c0_27] : memref<1x16x128xbf16, #tpu.memory_space<vmem>>, vector<1x16x128xbf16>
    %37 = vector.shape_cast %36 : vector<1x16x128xbf16> to vector<16x128xbf16>
    %cst_28 = arith.constant dense<0.000000e+00> : vector<16x32xf32>
    %38 = tpu.matmul %37, %35, %cst_28 {dimension_numbers = #tpu.dot_dimension_numbers<[1], [0], [0], [1], [0, 0, 1, 1], [], []>} : vector<16x128xbf16>, vector<128x32xbf16>, vector<16x32xf32> -> vector<16x32xf32>
    %39 = arith.truncf %38 : vector<16x32xf32> to vector<16x32xbf16>
    %c2_29 = arith.constant 2 : index
    %c0_30 = arith.constant 0 : index
    %c0_31 = arith.constant 0 : index
    %40 = vector.load %arg5[%c2_29, %c0_30, %c0_31] : memref<3x32x32xbf16, #tpu.memory_space<vmem>>, vector<1x32x32xbf16>
    %41 = vector.shape_cast %40 : vector<1x32x32xbf16> to vector<32x32xbf16>
    %cst_32 = arith.constant dense<0.000000e+00> : vector<16x32xf32>
    %42 = tpu.matmul %39, %41, %cst_32 {dimension_numbers = #tpu.dot_dimension_numbers<[1], [0], [0], [1], [0, 0, 1, 1], [], []>} : vector<16x32xbf16>, vector<32x32xbf16>, vector<16x32xf32> -> vector<16x32xf32>
    %c3 = arith.constant 3 : index
    %c0_33 = arith.constant 0 : index
    %43 = vector.load %arg7[%c3, %c0_33] : memref<5x128xf32, #tpu.memory_space<vmem>>, vector<1x32xf32>
    %44 = vector.broadcast %43 : vector<1x32xf32> to vector<16x32xf32>
    %45 = arith.addf %42, %44 : vector<16x32xf32>
    %cst_34 = arith.constant 0.000000e+00 : f32
    %46 = vector.broadcast %cst_34 : f32 to vector<16x32xf32>
    %47 = arith.maximumf %45, %46 : vector<16x32xf32>
    %48 = arith.truncf %47 : vector<16x32xf32> to vector<16x32xbf16>
    %c0_35 = arith.constant 0 : index
    %c0_36 = arith.constant 0 : index
    %49 = vector.load %arg6[%c0_35, %c0_36] : memref<32x128xbf16, #tpu.memory_space<vmem>>, vector<32x128xbf16>
    %cst_37 = arith.constant dense<0.000000e+00> : vector<16x128xf32>
    %50 = tpu.matmul %48, %49, %cst_37 {dimension_numbers = #tpu.dot_dimension_numbers<[1], [0], [0], [1], [0, 0, 1, 1], [], []>} : vector<16x32xbf16>, vector<32x128xbf16>, vector<16x128xf32> -> vector<16x128xf32>
    %c4 = arith.constant 4 : index
    %c0_38 = arith.constant 0 : index
    %51 = vector.load %arg7[%c4, %c0_38] : memref<5x128xf32, #tpu.memory_space<vmem>>, vector<1x128xf32>
    %52 = vector.broadcast %51 : vector<1x128xf32> to vector<16x128xf32>
    %53 = arith.addf %50, %52 : vector<16x128xf32>
    %c0_39 = arith.constant 0 : index
    %c0_40 = arith.constant 0 : index
    %c0_41 = arith.constant 0 : index
    %54 = vector.load %arg8[%c0_39, %c0_40, %c0_41] : memref<1x16x128xf32, #tpu.memory_space<vmem>>, vector<1x16x128xf32>
    %55 = vector.shape_cast %54 : vector<1x16x128xf32> to vector<16x128xf32>
    %56 = vector.shape_cast %53 : vector<16x128xf32> to vector<1x16x128xf32>
    tpu.vector_store %arg8[%c0_39, %c0_40, %c0_41], %56 {strides = array<i32>} : memref<1x16x128xf32, #tpu.memory_space<vmem>>, vector<1x16x128xf32>,
    return
  }
  func.func @transform_0(%arg0: i32) -> (i32, i32, i32) {
    %c0_i32 = arith.constant 0 : i32
    %c0_i32_0 = arith.constant 0 : i32
    %c0_i32_1 = arith.constant 0 : i32
    return %arg0, %c0_i32, %c0_i32_0 : i32, i32, i32
  }
  func.func @transform_1(%arg0: i32) -> (i32, i32, i32) {
    %c0_i32 = arith.constant 0 : i32
    %c0_i32_0 = arith.constant 0 : i32
    %c0_i32_1 = arith.constant 0 : i32
    return %arg0, %c0_i32, %c0_i32_0 : i32, i32, i32
  }
  func.func @transform_2(%arg0: i32) -> (i32, i32, i32) {
    %c0_i32 = arith.constant 0 : i32
    %c0_i32_0 = arith.constant 0 : i32
    %c0_i32_1 = arith.constant 0 : i32
    return %arg0, %c0_i32, %c0_i32_0 : i32, i32, i32
  }
  func.func @transform_3(%arg0: i32) -> (i32, i32) {
    %c0_i32 = arith.constant 0 : i32
    %c0_i32_0 = arith.constant 0 : i32
    %c0_i32_1 = arith.constant 0 : i32
    return %c0_i32, %c0_i32_0 : i32, i32
  }
  func.func @transform_4(%arg0: i32) -> (i32, i32, i32) {
    %c0_i32 = arith.constant 0 : i32
    %c0_i32_0 = arith.constant 0 : i32
    %c0_i32_1 = arith.constant 0 : i32
    %c0_i32_2 = arith.constant 0 : i32
    return %c0_i32, %c0_i32_0, %c0_i32_1 : i32, i32, i32
  }
  func.func @transform_5(%arg0: i32) -> (i32, i32) {
    %c0_i32 = arith.constant 0 : i32
    %c0_i32_0 = arith.constant 0 : i32
    %c0_i32_1 = arith.constant 0 : i32
    return %c0_i32, %c0_i32_0 : i32, i32
  }
  func.func @transform_6(%arg0: i32) -> (i32, i32) {
    %c0_i32 = arith.constant 0 : i32
    %c0_i32_0 = arith.constant 0 : i32
    %c0_i32_1 = arith.constant 0 : i32
    return %c0_i32, %c0_i32_0 : i32, i32
  }
  func.func @transform_7(%arg0: i32) -> (i32, i32, i32) {
    %c0_i32 = arith.constant 0 : i32
    %c0_i32_0 = arith.constant 0 : i32
    %c0_i32_1 = arith.constant 0 : i32
    return %arg0, %c0_i32, %c0_i32_0 : i32, i32, i32
  }
}

</mosaic_0001>

<llo_original>
// kernel: tpu_custom_call.1
$region0: #{tpu_custom_call.1}
  #allocation0 [shape = 'u32[]', space=smem, size = 0x4, offset = 0x4, fixed_abs, tag = 'smem constant byte address 0x4 - core index']
  #allocation1 [shape = 'u32[144,128]{1,0:T(1,128)}', space=vmem, size = 0x12000, scoped, tag = 'internal scratch']
  %s0 = inlined_call_operand.vmem [shape: bf16[1,128,128], index: 0, kind: input, shape index: {}]
  %s1 = inlined_call_operand.vmem [shape: bf16[1,128,32], index: 1, kind: input, shape index: {}]
  %s2 = inlined_call_operand.hbm [shape: bf16[1,16,128], index: 2, kind: input, shape index: {}]
  %s3 = inlined_call_operand.vmem [shape: bf16[32,32], index: 3, kind: input, shape index: {}]
  %s4 = inlined_call_operand.hbm [shape: bf16[3,32,32], index: 4, kind: input, shape index: {}]
  %s5 = inlined_call_operand.vmem [shape: bf16[32,128], index: 5, kind: input, shape index: {}]
  %s6 = inlined_call_operand.hbm [shape: f32[5,128], index: 6, kind: input, shape index: {}]
  %s7 = inlined_call_operand.hbm [shape: f32[1,16,128], index: 7, kind: output, shape index: {}]
  %s8 = sld [smem:[#allocation0]]
  $region50: #{tpu_custom_call.1} parent=0
    _
  %s10 = ssub.s32 1, %s8
  %s11 = scalar_select 0, %s10, %s8
  $region1: #{tpu_custom_call.1} parent=0
    #allocation2 [shape = 'u8[4096]{0}', space=vmem, size = 0x1000, scoped, tag = 'input window, operand 2, single buffered']
    #allocation3 [shape = 's32[1]{0}', space=sflag, size = 0x4, scoped, tag = 'scoped memory for tpu_custom_call.1']
    #allocation4 [shape = 's32[1]{0}', space=sflag, size = 0x4, scoped, tag = 'scoped memory for tpu_custom_call.1']
    #allocation5 [shape = 'u8[24576]{0}', space=vmem, size = 0x6000, scoped, tag = 'input window, operand 4, single buffered']
    #allocation6 [shape = 's32[1]{0}', space=sflag, size = 0x4, scoped, tag = 'scoped memory for tpu_custom_call.1']
    #allocation7 [shape = 'u8[4096]{0}', space=vmem, size = 0x1000, scoped, tag = 'input window, operand 6, single buffered']
    #allocation8 [shape = 'u8[8192]{0}', space=vmem, size = 0x2000, scoped, tag = 'output window, operand 0, single buffered']
    %12 = vsyncpa [#allocation3], 0
    %13 = vsyncpa [#allocation6], 0
    %14 = vsyncpa [#allocation4], 0
    // Predicated region
    $region2: #{tpu_custom_call.1} parent=1 // pred_check
      _
    $region3: #{tpu_custom_call.1} parent=1 // pred_check_branch
      %16 = sbr.rel (0) target = $region5
    $region4: #{tpu_custom_call.1} parent=1 // pred_region
      _
    $region5: #{tpu_custom_call.1} parent=1 // pred_fallthru
      _
    // Predicated region
    $region6: #{tpu_custom_call.1} parent=1 // pred_check
      _
    $region7: #{tpu_custom_call.1} parent=1 // pred_check_branch
      %18 = sbr.rel (0) target = $region9
    $region8: #{tpu_custom_call.1} parent=1 // pred_region
      _
    $region9: #{tpu_custom_call.1} parent=1 // pred_fallthru
      _
    // Predicated region
    $region10: #{tpu_custom_call.1} parent=1 // pred_check
      _
    $region11: #{tpu_custom_call.1} parent=1 // pred_check_branch
      %20 = sbr.rel (0) target = $region13
    $region12: #{tpu_custom_call.1} parent=1 // pred_region
      %s22 = ssub.s32 128, 128
      %23 = vsyncadd [#allocation3], %s22
      %s24 = sshll.u32 [#allocation2], 4
      %s25 = int_to_ptr.vmem [resolvable:$true] %s24
      %30 = dma.hbm_to_vmem [thread:$0]  %s2, 128, %s25, [#allocation3], 64, 64, 4
    $region13: #{tpu_custom_call.1} parent=1 // pred_fallthru
      _
    // Predicated region
    $region14: #{tpu_custom_call.1} parent=1 // pred_check
      _
    $region15: #{tpu_custom_call.1} parent=1 // pred_check_branch
      %32 = sbr.rel (0) target = $region17
    $region16: #{tpu_custom_call.1} parent=1 // pred_region
      _
    $region17: #{tpu_custom_call.1} parent=1 // pred_fallthru
      _
    // Predicated region
    $region18: #{tpu_custom_call.1} parent=1 // pred_check
      _
    $region19: #{tpu_custom_call.1} parent=1 // pred_check_branch
      %34 = sbr.rel (0) target = $region21
    $region20: #{tpu_custom_call.1} parent=1 // pred_region
      %s36 = ssub.s32 768, 768
      %37 = vsyncadd [#allocation6], %s36
      %s38 = sshll.u32 [#allocation5], 4
      %s39 = int_to_ptr.vmem [resolvable:$true] %s38
      %44 = dma.hbm_to_vmem [thread:$0]  %s4, 768, %s39, [#allocation6], 64, 64, 4
    $region21: #{tpu_custom_call.1} parent=1 // pred_fallthru
      _
    // Predicated region
    $region22: #{tpu_custom_call.1} parent=1 // pred_check
      _
    $region23: #{tpu_custom_call.1} parent=1 // pred_check_branch
      %46 = sbr.rel (0) target = $region25
    $region24: #{tpu_custom_call.1} parent=1 // pred_region
      _
    $region25: #{tpu_custom_call.1} parent=1 // pred_fallthru
      _
    // Predicated region
    $region26: #{tpu_custom_call.1} parent=1 // pred_check
      _
    $region27: #{tpu_custom_call.1} parent=1 // pred_check_branch
      %48 = sbr.rel (0) target = $region29
    $region28: #{tpu_custom_call.1} parent=1 // pred_region
      %s50 = ssub.s32 128, 128
      %51 = vsyncadd [#allocation6], %s50
      %s53 = sshll.u32 [#allocation7], 4
      %s54 = int_to_ptr.vmem [resolvable:$true] %s53
      %56 = dma.hbm_to_vmem [thread:$0]  %s6, 128, %s54, [#allocation6]
    $region29: #{tpu_custom_call.1} parent=1 // pred_fallthru
      _
    // Predicated region
    $region30: #{tpu_custom_call.1} parent=1 // pred_check
      _
    $region31: #{tpu_custom_call.1} parent=1 // pred_check_branch
      %58 = sbr.rel (0) target = $region33
    $region32: #{tpu_custom_call.1} parent=1 // pred_region
      %59 = dma.done [#allocation3], 128
    $region33: #{tpu_custom_call.1} parent=1 // pred_fallthru
      _
    // Predicated region
    $region34: #{tpu_custom_call.1} parent=1 // pred_check
      _
    $region35: #{tpu_custom_call.1} parent=1 // pred_check_branch
      %61 = sbr.rel (0) target = $region37
    $region36: #{tpu_custom_call.1} parent=1 // pred_region
      %62 = dma.done [#allocation6], 768
    $region37: #{tpu_custom_call.1} parent=1 // pred_fallthru
      _
    // Predicated region
    $region38: #{tpu_custom_call.1} parent=1 // pred_check
      _
    $region39: #{tpu_custom_call.1} parent=1 // pred_check_branch
      %64 = sbr.rel (0) target = $region41
    $region40: #{tpu_custom_call.1} parent=1 // pred_region
      %65 = dma.done [#allocation6], 128
    $region41: #{tpu_custom_call.1} parent=1 // pred_fallthru
      _
    %v67 = vld [vmem:[%s0] sm:$0xf]
    %v68 = vld [vmem:[%s0 + $0x4] sm:$0xf]
    %v69 = vld [vmem:[%s0 + $0x8] sm:$0xf]
    %v70 = vld [vmem:[%s0 + $0xc] sm:$0xf]
    %v71 = vld [vmem:[%s0 + $0x10] sm:$0xf]
    %v72 = vld [vmem:[%s0 + $0x14] sm:$0xf]
    %v73 = vld [vmem:[%s0 + $0x18] sm:$0xf]
    %v74 = vld [vmem:[%s0 + $0x1c] sm:$0xf]
    %v75 = vld [vmem:[%s0 + $0x20] sm:$0xf]
    %v76 = vld [vmem:[%s0 + $0x24] sm:$0xf]
    %v77 = vld [vmem:[%s0 + $0x28] sm:$0xf]
    %v78 = vld [vmem:[%s0 + $0x2c] sm:$0xf]
    %v79 = vld [vmem:[%s0 + $0x30] sm:$0xf]
    %v80 = vld [vmem:[%s0 + $0x34] sm:$0xf]
    %v81 = vld [vmem:[%s0 + $0x38] sm:$0xf]
    %v82 = vld [vmem:[%s0 + $0x3c] sm:$0xf]
    %v83 = vld [vmem:[%s1] sm:$0xf]
    %v84 = vld [vmem:[%s1 + $0x4] sm:$0xf]
    %v85 = vld [vmem:[%s1 + $0x8] sm:$0xf]
    %v86 = vld [vmem:[%s1 + $0xc] sm:$0xf]
    %v87 = vld [vmem:[%s1 + $0x10] sm:$0xf]
    %v88 = vld [vmem:[%s1 + $0x14] sm:$0xf]
    %v89 = vld [vmem:[%s1 + $0x18] sm:$0xf]
    %v90 = vld [vmem:[%s1 + $0x1c] sm:$0xf]
    %v91 = vld [vmem:[%s1 + $0x20] sm:$0xf]
    %v92 = vld [vmem:[%s1 + $0x24] sm:$0xf]
    %v93 = vld [vmem:[%s1 + $0x28] sm:$0xf]
    %v94 = vld [vmem:[%s1 + $0x2c] sm:$0xf]
    %v95 = vld [vmem:[%s1 + $0x30] sm:$0xf]
    %v96 = vld [vmem:[%s1 + $0x34] sm:$0xf]
    %v97 = vld [vmem:[%s1 + $0x38] sm:$0xf]
    %v98 = vld [vmem:[%s1 + $0x3c] sm:$0xf]
    %v99 = vld [vmem:[%s3] sm:$0xf]
    %v100 = vld [vmem:[%s3 + $0x4] sm:$0xf]
    %v101 = vld [vmem:[%s3 + $0x8] sm:$0xf]
    %v102 = vld [vmem:[%s3 + $0xc] sm:$0xf]
    %v119 = vunpack.c.l.b16 %v83
    %v120 = vunpack.c.l.b16 %v84
    %v121 = vunpack.c.l.b16 %v85
    %v122 = vunpack.c.l.b16 %v86
    %v123 = vunpack.c.l.b16 %v87
    %v124 = vunpack.c.l.b16 %v88
    %v125 = vunpack.c.l.b16 %v89
    %v126 = vunpack.c.l.b16 %v90
    %v127 = vunpack.c.l.b16 %v91
    %v128 = vunpack.c.l.b16 %v92
    %v129 = vunpack.c.l.b16 %v93
    %v130 = vunpack.c.l.b16 %v94
    %v131 = vunpack.c.l.b16 %v95
    %v132 = vunpack.c.l.b16 %v96
    %v133 = vunpack.c.l.b16 %v97
    %v134 = vunpack.c.l.b16 %v98
    %v135 = vpack.c.b16 %v120, %v119
    %v136 = vpack.c.b16 %v122, %v121
    %v137 = vpack.c.b16 %v124, %v123
    %v138 = vpack.c.b16 %v126, %v125
    %v139 = vpack.c.b16 %v128, %v127
    %v140 = vpack.c.b16 %v130, %v129
    %v141 = vpack.c.b16 %v132, %v131
    %v142 = vpack.c.b16 %v134, %v133
    %v147 = vunpack.c.l.b16 %v99
    %v148 = vunpack.c.l.b16 %v100
    %v149 = vunpack.c.l.b16 %v101
    %v150 = vunpack.c.l.b16 %v102
    %v151 = vpack.c.b16 %v148, %v147
    %v152 = vpack.c.b16 %v150, %v149
    %vm155 = vcmask 261120
    %v157 = vsel %vm155, %v135, 0
    %v160 = vsel %vm155, %v136, 0
    %v163 = vsel %vm155, %v137, 0
    %v166 = vsel %vm155, %v138, 0
    %v169 = vsel %vm155, %v139, 0
    %v172 = vsel %vm155, %v140, 0
    %v175 = vsel %vm155, %v141, 0
    %v178 = vsel %vm155, %v142, 0
    %180 = vmatprep.subr.bf16.mxu0 0
    %181 = vmatpush1.bf16.msra.mxu0 %v151
    %182 = vmatprep.subr.bf16.mxu0 0
    %183 = vmatpush1.bf16.msra.mxu0 %v152
    %184 = vmatprep.subr.bf16.mxu0 0
    %185 = vmatpush1.bf16.msra.mxu0 0
    %186 = vmatprep.subr.bf16.mxu0 0
    %187 = vmatpush1.bf16.msra.mxu0 0
    %188 = vmatprep.subr.bf16.mxu0 0
    %189 = vmatpush1.bf16.msra.mxu0 0
    %190 = vmatprep.subr.bf16.mxu0 0
    %191 = vmatpush1.bf16.msra.mxu0 0
    %192 = vmatprep.subr.bf16.mxu0 0
    %193 = vmatpush1.bf16.msra.mxu0 0
    %194 = vmatprep.subr.bf16.mxu0 0
    %195 = vmatpush1.bf16.msra.mxu0 0
    %196 = vmatprep.subr.bf16.mxu0 0
    %197 = vmatpush1.bf16.msra.mxu0 0
    %198 = vmatprep.subr.bf16.mxu0 0
    %199 = vmatpush1.bf16.msra.mxu0 0
    %200 = vmatprep.subr.bf16.mxu0 0
    %201 = vmatpush1.bf16.msra.mxu0 0
    %202 = vmatprep.subr.bf16.mxu0 0
    %203 = vmatpush1.bf16.msra.mxu0 0
    %204 = vmatprep.subr.bf16.mxu0 0
    %205 = vmatpush1.bf16.msra.mxu0 0
    %206 = vmatprep.subr.bf16.mxu0 0
    %207 = vmatpush1.bf16.msra.mxu0 0
    %208 = vmatprep.subr.bf16.mxu0 0
    %209 = vmatpush1.bf16.msra.mxu0 0
    %210 = vmatprep.subr.bf16.mxu0 0
    %211 = vmatpush1.bf16.msra.mxu0 0
    %212 = vmatprep.mubr.bf16.mxu0 0
    %213 = vmatmul.mubr.bf16.gmra.mrb[0].mxu0 %v157
    %v214 = vpop.f32.mrb[0].mxu0
    %v215 = vadd.f32 0.0, %v214
    %v216 = vpop.f32.mrb[0].mxu0
    %v217 = vpop.f32.mrb[0].mxu0
    %v218 = vadd.f32 0.0, %v217
    %v219 = vpop.f32.mrb[0].mxu0
    %220 = vmatprep.mubr.bf16.mxu0 0
    %221 = vmatmul.mubr.bf16.gmra.mrb[0].mxu0 %v160
    %v222 = vpop.f32.mrb[0].mxu0
    %v223 = vadd.f32 0.0, %v222
    %v224 = vpop.f32.mrb[0].mxu0
    %v225 = vpop.f32.mrb[0].mxu0
    %v226 = vadd.f32 0.0, %v225
    %v227 = vpop.f32.mrb[0].mxu0
    %228 = vmatprep.mubr.bf16.mxu0 0
    %229 = vmatmul.mubr.bf16.gmra.mrb[0].mxu0 %v163
    %v230 = vpop.f32.mrb[0].mxu0
    %v231 = vadd.f32 0.0, %v230
    %v232 = vpop.f32.mrb[0].mxu0
    %v233 = vpop.f32.mrb[0].mxu0
    %v234 = vadd.f32 0.0, %v233
    %v235 = vpop.f32.mrb[0].mxu0
    %236 = vmatprep.mubr.bf16.mxu0 0
    %237 = vmatmul.mubr.bf16.gmra.mrb[0].mxu0 %v166
    %v238 = vpop.f32.mrb[0].mxu0
    %v239 = vadd.f32 0.0, %v238
    %v240 = vpop.f32.mrb[0].mxu0
    %v241 = vpop.f32.mrb[0].mxu0
    %v242 = vadd.f32 0.0, %v241
    %v243 = vpop.f32.mrb[0].mxu0
    %244 = vmatprep.mubr.bf16.mxu0 0
    %245 = vmatmul.mubr.bf16.gmra.mrb[0].mxu0 %v169
    %v246 = vpop.f32.mrb[0].mxu0
    %v247 = vadd.f32 0.0, %v246
    %v248 = vpop.f32.mrb[0].mxu0
    %v249 = vpop.f32.mrb[0].mxu0
    %v250 = vadd.f32 0.0, %v249
    %v251 = vpop.f32.mrb[0].mxu0
    %252 = vmatprep.mubr.bf16.mxu0 0
    %253 = vmatmul.mubr.bf16.gmra.mrb[0].mxu0 %v172
    %v254 = vpop.f32.mrb[0].mxu0
    %v255 = vadd.f32 0.0, %v254
    %v256 = vpop.f32.mrb[0].mxu0
    %v257 = vpop.f32.mrb[0].mxu0
    %v258 = vadd.f32 0.0, %v257
    %v259 = vpop.f32.mrb[0].mxu0
    %260 = vmatprep.mubr.bf16.mxu0 0
    %261 = vmatmul.mubr.bf16.gmra.mrb[0].mxu0 %v175
    %v262 = vpop.f32.mrb[0].mxu0
    %v263 = vadd.f32 0.0, %v262
    %v264 = vpop.f32.mrb[0].mxu0
    %v265 = vpop.f32.mrb[0].mxu0
    %v266 = vadd.f32 0.0, %v265
    %v267 = vpop.f32.mrb[0].mxu0
    %268 = vmatprep.mubr.bf16.mxu0 0
    %269 = vmatmul.mubr.bf16.gmra.mrb[0].mxu0 %v178
    %v270 = vpop.f32.mrb[0].mxu0
    %v271 = vadd.f32 0.0, %v270
    %v272 = vpop.f32.mrb[0].mxu0
    %v273 = vpop.f32.mrb[0].mxu0
    %v274 = vadd.f32 0.0, %v273
    %v275 = vpop.f32.mrb[0].mxu0
    %276 = vdwg.mxu0
    %v277 = vpack.c.bf16 %v218, %v215
    %v278 = vpack.c.bf16 %v226, %v223
    %v279 = vpack.c.bf16 %v234, %v231
    %v280 = vpack.c.bf16 %v242, %v239
    %v281 = vpack.c.bf16 %v250, %v247
    %v282 = vpack.c.bf16 %v258, %v255
    %v283 = vpack.c.bf16 %v266, %v263
    %v284 = vpack.c.bf16 %v274, %v271
    %v285 = vld [vmem:[#allocation7] sm:$0x1]
    %v286 = vlaneseq
    %v287 = vshrl.u32 %v286, 7
    %v288 = vsub.s32 0, %v287
    %v289 = vrot.slane %v285, %v288
    %v306 = vunpack.c.l.b16 %v67
    %v307 = vunpack.c.l.b16 %v68
    %v308 = vunpack.c.l.b16 %v69
    %v309 = vunpack.c.l.b16 %v70
    %v310 = vunpack.c.l.b16 %v71
    %v311 = vunpack.c.l.b16 %v72
    %v312 = vunpack.c.l.b16 %v73
    %v313 = vunpack.c.l.b16 %v74
    %v314 = vunpack.c.l.b16 %v75
    %v315 = vunpack.c.l.b16 %v76
    %v316 = vunpack.c.l.b16 %v77
    %v317 = vunpack.c.l.b16 %v78
    %v318 = vunpack.c.l.b16 %v79
    %v319 = vunpack.c.l.b16 %v80
    %v320 = vunpack.c.l.b16 %v81
    %v321 = vunpack.c.l.b16 %v82
    %v322 = vpack.c.b16 %v307, %v306
    %v323 = vpack.c.b16 %v309, %v308
    %v324 = vpack.c.b16 %v311, %v310
    %v325 = vpack.c.b16 %v313, %v312
    %v326 = vpack.c.b16 %v315, %v314
    %v327 = vpack.c.b16 %v317, %v316
    %v328 = vpack.c.b16 %v319, %v318
    %v329 = vpack.c.b16 %v321, %v320
    %338 = vmatprep.subr.bf16.mxu0 0
    %339 = vmatpush1.bf16.msra.mxu0 %v277
    %340 = vmatprep.subr.bf16.mxu0 0
    %341 = vmatpush1.bf16.msra.mxu0 %v278
    %342 = vmatprep.subr.bf16.mxu0 0
    %343 = vmatpush1.bf16.msra.mxu0 %v279
    %344 = vmatprep.subr.bf16.mxu0 0
    %345 = vmatpush1.bf16.msra.mxu0 %v280
    %346 = vmatprep.subr.bf16.mxu0 0
    %347 = vmatpush1.bf16.msra.mxu0 %v281
    %348 = vmatprep.subr.bf16.mxu0 0
    %349 = vmatpush1.bf16.msra.mxu0 %v282
    %350 = vmatprep.subr.bf16.mxu0 0
    %351 = vmatpush1.bf16.msra.mxu0 %v283
    %352 = vmatprep.subr.bf16.mxu0 0
    %353 = vmatpush1.bf16.msra.mxu0 %v284
    %354 = vmatprep.subr.bf16.mxu0 0
    %355 = vmatpush1.bf16.msra.mxu0 0
    %356 = vmatprep.subr.bf16.mxu0 0
    %357 = vmatpush1.bf16.msra.mxu0 0
    %358 = vmatprep.subr.bf16.mxu0 0
    %359 = vmatpush1.bf16.msra.mxu0 0
    %360 = vmatprep.subr.bf16.mxu0 0
    %361 = vmatpush1.bf16.msra.mxu0 0
    %362 = vmatprep.subr.bf16.mxu0 0
    %363 = vmatpush1.bf16.msra.mxu0 0
    %364 = vmatprep.subr.bf16.mxu0 0
    %365 = vmatpush1.bf16.msra.mxu0 0
    %366 = vmatprep.subr.bf16.mxu0 0
    %367 = vmatpush1.bf16.msra.mxu0 0
    %368 = vmatprep.subr.bf16.mxu0 0
    %369 = vmatpush1.bf16.msra.mxu0 0
    %370 = vmatprep.mubr.bf16.mxu0 0
    %371 = vmatmul.mubr.bf16.gmra.mrb[0].mxu0 %v322
    %v372 = vpop.f32.mrb[0].mxu0
    %v373 = vadd.f32 %v289, %v372
    %v374 = vpop.f32.mrb[0].mxu0
    %v375 = vpop.f32.mrb[0].mxu0
    %v376 = vadd.f32 %v289, %v375
    %v377 = vpop.f32.mrb[0].mxu0
    %378 = vmatprep.mubr.bf16.mxu0 0
    %379 = vmatmul.mubr.bf16.gmra.mrb[0].mxu0 %v323
    %v380 = vpop.f32.mrb[0].mxu0
    %v381 = vadd.f32 %v289, %v380
    %v382 = vpop.f32.mrb[0].mxu0
    %v383 = vpop.f32.mrb[0].mxu0
    %v384 = vadd.f32 %v289, %v383
    %v385 = vpop.f32.mrb[0].mxu0
    %386 = vmatprep.mubr.bf16.mxu0 0
    %387 = vmatmul.mubr.bf16.gmra.mrb[0].mxu0 %v324
    %v388 = vpop.f32.mrb[0].mxu0
    %v389 = vadd.f32 %v289, %v388
    %v390 = vpop.f32.mrb[0].mxu0
    %v391 = vpop.f32.mrb[0].mxu0
    %v392 = vadd.f32 %v289, %v391
    %v393 = vpop.f32.mrb[0].mxu0
    %394 = vmatprep.mubr.bf16.mxu0 0
    %395 = vmatmul.mubr.bf16.gmra.mrb[0].mxu0 %v325
    %v396 = vpop.f32.mrb[0].mxu0
    %v397 = vadd.f32 %v289, %v396
    %v398 = vpop.f32.mrb[0].mxu0
    %v399 = vpop.f32.mrb[0].mxu0
    %v400 = vadd.f32 %v289, %v399
    %v401 = vpop.f32.mrb[0].mxu0
    %402 = vmatprep.mubr.bf16.mxu0 0
    %403 = vmatmul.mubr.bf16.gmra.mrb[0].mxu0 %v326
    %v404 = vpop.f32.mrb[0].mxu0
    %v405 = vadd.f32 %v289, %v404
    %v406 = vpop.f32.mrb[0].mxu0
    %v407 = vpop.f32.mrb[0].mxu0
    %v408 = vadd.f32 %v289, %v407
    %v409 = vpop.f32.mrb[0].mxu0
    %410 = vmatprep.mubr.bf16.mxu0 0
    %411 = vmatmul.mubr.bf16.gmra.mrb[0].mxu0 %v327
    %v412 = vpop.f32.mrb[0].mxu0
    %v413 = vadd.f32 %v289, %v412
    %v414 = vpop.f32.mrb[0].mxu0
    %v415 = vpop.f32.mrb[0].mxu0
    %v416 = vadd.f32 %v289, %v415
    %v417 = vpop.f32.mrb[0].mxu0
    %418 = vmatprep.mubr.bf16.mxu0 0
    %419 = vmatmul.mubr.bf16.gmra.mrb[0].mxu0 %v328
    %v420 = vpop.f32.mrb[0].mxu0
    %v421 = vadd.f32 %v289, %v420
    %v422 = vpop.f32.mrb[0].mxu0
    %v423 = vpop.f32.mrb[0].mxu0
    %v424 = vadd.f32 %v289, %v423
    %v425 = vpop.f32.mrb[0].mxu0
    %426 = vmatprep.mubr.bf16.mxu0 0
    %427 = vmatmul.mubr.bf16.gmra.mrb[0].mxu0 %v329
    %v428 = vpop.f32.mrb[0].mxu0
    %v429 = vadd.f32 %v289, %v428
    %v430 = vpop.f32.mrb[0].mxu0
    %v431 = vpop.f32.mrb[0].mxu0
    %v432 = vadd.f32 %v289, %v431
    %v433 = vpop.f32.mrb[0].mxu0
    %434 = vdwg.mxu0
    %v435 = vmax.f32 %v373, 0.0
    %v436 = vmax.f32 %v376, 0.0
    %v437 = vmax.f32 %v381, 0.0
    %v438 = vmax.f32 %v384, 0.0
    %v439 = vmax.f32 %v389, 0.0
    %v440 = vmax.f32 %v392, 0.0
    %v441 = vmax.f32 %v397, 0.0
    %v442 = vmax.f32 %v400, 0.0
    %v443 = vmax.f32 %v405, 0.0
    %v444 = vmax.f32 %v408, 0.0
    %v445 = vmax.f32 %v413, 0.0
    %v446 = vmax.f32 %v416, 0.0
    %v447 = vmax.f32 %v421, 0.0
    %v448 = vmax.f32 %v424, 0.0
    %v449 = vmax.f32 %v429, 0.0
    %v450 = vmax.f32 %v432, 0.0
    %v451 = vpack.c.bf16 %v436, %v435
    %v452 = vpack.c.bf16 %v438, %v437
    %v453 = vpack.c.bf16 %v440, %v439
    %v454 = vpack.c.bf16 %v442, %v441
    %v455 = vpack.c.bf16 %v444, %v443
    %v456 = vpack.c.bf16 %v446, %v445
    %v457 = vpack.c.bf16 %v448, %v447
    %v458 = vpack.c.bf16 %v450, %v449
    %v459 = vld [vmem:[#allocation5] sm:$0xf]
    %v460 = vld [vmem:[#allocation5 + $0x4] sm:$0xf]
    %v461 = vld [vmem:[#allocation5 + $0x8] sm:$0xf]
    %v462 = vld [vmem:[#allocation5 + $0xc] sm:$0xf]
    %v467 = vunpack.c.l.b16 %v459
    %v468 = vunpack.c.l.b16 %v460
    %v469 = vunpack.c.l.b16 %v461
    %v470 = vunpack.c.l.b16 %v462
    %v471 = vpack.c.b16 %v468, %v467
    %v472 = vpack.c.b16 %v470, %v469
    %v476 = vsel %vm155, %v451, 0
    %v479 = vsel %vm155, %v452, 0
    %v482 = vsel %vm155, %v453, 0
    %v485 = vsel %vm155, %v454, 0
    %v488 = vsel %vm155, %v455, 0
    %v491 = vsel %vm155, %v456, 0
    %v494 = vsel %vm155, %v457, 0
    %v497 = vsel %vm155, %v458, 0
    %499 = vmatprep.subr.bf16.mxu0 0
    %500 = vmatpush1.bf16.msra.mxu0 %v471
    %501 = vmatprep.subr.bf16.mxu0 0
    %502 = vmatpush1.bf16.msra.mxu0 %v472
    %503 = vmatprep.subr.bf16.mxu0 0
    %504 = vmatpush1.bf16.msra.mxu0 0
    %505 = vmatprep.subr.bf16.mxu0 0
    %506 = vmatpush1.bf16.msra.mxu0 0
    %507 = vmatprep.subr.bf16.mxu0 0
    %508 = vmatpush1.bf16.msra.mxu0 0
    %509 = vmatprep.subr.bf16.mxu0 0
    %510 = vmatpush1.bf16.msra.mxu0 0
    %511 = vmatprep.subr.bf16.mxu0 0
    %512 = vmatpush1.bf16.msra.mxu0 0
    %513 = vmatprep.subr.bf16.mxu0 0
    %514 = vmatpush1.bf16.msra.mxu0 0
    %515 = vmatprep.subr.bf16.mxu0 0
    %516 = vmatpush1.bf16.msra.mxu0 0
    %517 = vmatprep.subr.bf16.mxu0 0
    %518 = vmatpush1.bf16.msra.mxu0 0
    %519 = vmatprep.subr.bf16.mxu0 0
    %520 = vmatpush1.bf16.msra.mxu0 0
    %521 = vmatprep.subr.bf16.mxu0 0
    %522 = vmatpush1.bf16.msra.mxu0 0
    %523 = vmatprep.subr.bf16.mxu0 0
    %524 = vmatpush1.bf16.msra.mxu0 0
    %525 = vmatprep.subr.bf16.mxu0 0
    %526 = vmatpush1.bf16.msra.mxu0 0
    %527 = vmatprep.subr.bf16.mxu0 0
    %528 = vmatpush1.bf16.msra.mxu0 0
    %529 = vmatprep.subr.bf16.mxu0 0
    %530 = vmatpush1.bf16.msra.mxu0 0
    %531 = vmatprep.mubr.bf16.mxu0 0
    %532 = vmatmul.mubr.bf16.gmra.mrb[0].mxu0 %v476
    %v533 = vpop.f32.mrb[0].mxu0
    %v534 = vadd.f32 0.0, %v533
    %v535 = vpop.f32.mrb[0].mxu0
    %v536 = vpop.f32.mrb[0].mxu0
    %v537 = vadd.f32 0.0, %v536
    %v538 = vpop.f32.mrb[0].mxu0
    %539 = vmatprep.mubr.bf16.mxu0 0
    %540 = vmatmul.mubr.bf16.gmra.mrb[0].mxu0 %v479
    %v541 = vpop.f32.mrb[0].mxu0
    %v542 = vadd.f32 0.0, %v541
    %v543 = vpop.f32.mrb[0].mxu0
    %v544 = vpop.f32.mrb[0].mxu0
    %v545 = vadd.f32 0.0, %v544
    %v546 = vpop.f32.mrb[0].mxu0
    %547 = vmatprep.mubr.bf16.mxu0 0
    %548 = vmatmul.mubr.bf16.gmra.mrb[0].mxu0 %v482
    %v549 = vpop.f32.mrb[0].mxu0
    %v550 = vadd.f32 0.0, %v549
    %v551 = vpop.f32.mrb[0].mxu0
    %v552 = vpop.f32.mrb[0].mxu0
    %v553 = vadd.f32 0.0, %v552
    %v554 = vpop.f32.mrb[0].mxu0
    %555 = vmatprep.mubr.bf16.mxu0 0
    %556 = vmatmul.mubr.bf16.gmra.mrb[0].mxu0 %v485
    %v557 = vpop.f32.mrb[0].mxu0
    %v558 = vadd.f32 0.0, %v557
    %v559 = vpop.f32.mrb[0].mxu0
    %v560 = vpop.f32.mrb[0].mxu0
    %v561 = vadd.f32 0.0, %v560
    %v562 = vpop.f32.mrb[0].mxu0
    %563 = vmatprep.mubr.bf16.mxu0 0
    %564 = vmatmul.mubr.bf16.gmra.mrb[0].mxu0 %v488
    %v565 = vpop.f32.mrb[0].mxu0
    %v566 = vadd.f32 0.0, %v565
    %v567 = vpop.f32.mrb[0].mxu0
    %v568 = vpop.f32.mrb[0].mxu0
    %v569 = vadd.f32 0.0, %v568
    %v570 = vpop.f32.mrb[0].mxu0
    %571 = vmatprep.mubr.bf16.mxu0 0
    %572 = vmatmul.mubr.bf16.gmra.mrb[0].mxu0 %v491
    %v573 = vpop.f32.mrb[0].mxu0
    %v574 = vadd.f32 0.0, %v573
    %v575 = vpop.f32.mrb[0].mxu0
    %v576 = vpop.f32.mrb[0].mxu0
    %v577 = vadd.f32 0.0, %v576
    %v578 = vpop.f32.mrb[0].mxu0
    %579 = vmatprep.mubr.bf16.mxu0 0
    %580 = vmatmul.mubr.bf16.gmra.mrb[0].mxu0 %v494
    %v581 = vpop.f32.mrb[0].mxu0
    %v582 = vadd.f32 0.0, %v581
    %v583 = vpop.f32.mrb[0].mxu0
    %v584 = vpop.f32.mrb[0].mxu0
    %v585 = vadd.f32 0.0, %v584
    %v586 = vpop.f32.mrb[0].mxu0
    %587 = vmatprep.mubr.bf16.mxu0 0
    %588 = vmatmul.mubr.bf16.gmra.mrb[0].mxu0 %v497
    %v589 = vpop.f32.mrb[0].mxu0
    %v590 = vadd.f32 0.0, %v589
    %v591 = vpop.f32.mrb[0].mxu0
    %v592 = vpop.f32.mrb[0].mxu0
    %v593 = vadd.f32 0.0, %v592
    %v594 = vpop.f32.mrb[0].mxu0
    %595 = vdwg.mxu0
    %v596 = vpack.c.bf16 %v537, %v534
    %v597 = vpack.c.bf16 %v545, %v542
    %v598 = vpack.c.bf16 %v553, %v550
    %v599 = vpack.c.bf16 %v561, %v558
    %v600 = vpack.c.bf16 %v569, %v566
    %v601 = vpack.c.bf16 %v577, %v574
    %v602 = vpack.c.bf16 %v585, %v582
    %v603 = vpack.c.bf16 %v593, %v590
    %v604 = vld [vmem:[#allocation7 + $0x1] sm:$0x1]
    %v605 = vlaneseq
    %v606 = vshrl.u32 %v605, 7
    %v607 = vsub.s32 0, %v606
    %v608 = vrot.slane %v604, %v607
    %609 = vmatprep.subr.bf16.mxu0 0
    %610 = vmatpush1.bf16.msra.mxu0 %v596
    %611 = vmatprep.subr.bf16.mxu0 0
    %612 = vmatpush1.bf16.msra.mxu0 %v597
    %613 = vmatprep.subr.bf16.mxu0 0
    %614 = vmatpush1.bf16.msra.mxu0 %v598
    %615 = vmatprep.subr.bf16.mxu0 0
    %616 = vmatpush1.bf16.msra.mxu0 %v599
    %617 = vmatprep.subr.bf16.mxu0 0
    %618 = vmatpush1.bf16.msra.mxu0 %v600
    %619 = vmatprep.subr.bf16.mxu0 0
    %620 = vmatpush1.bf16.msra.mxu0 %v601
    %621 = vmatprep.subr.bf16.mxu0 0
    %622 = vmatpush1.bf16.msra.mxu0 %v602
    %623 = vmatprep.subr.bf16.mxu0 0
    %624 = vmatpush1.bf16.msra.mxu0 %v603
    %625 = vmatprep.subr.bf16.mxu0 0
    %626 = vmatpush1.bf16.msra.mxu0 0
    %627 = vmatprep.subr.bf16.mxu0 0
    %628 = vmatpush1.bf16.msra.mxu0 0
    %629 = vmatprep.subr.bf16.mxu0 0
    %630 = vmatpush1.bf16.msra.mxu0 0
    %631 = vmatprep.subr.bf16.mxu0 0
    %632 = vmatpush1.bf16.msra.mxu0 0
    %633 = vmatprep.subr.bf16.mxu0 0
    %634 = vmatpush1.bf16.msra.mxu0 0
    %635 = vmatprep.subr.bf16.mxu0 0
    %636 = vmatpush1.bf16.msra.mxu0 0
    %637 = vmatprep.subr.bf16.mxu0 0
    %638 = vmatpush1.bf16.msra.mxu0 0
    %639 = vmatprep.subr.bf16.mxu0 0
    %640 = vmatpush1.bf16.msra.mxu0 0
    %641 = vmatprep.mubr.bf16.mxu0 0
    %642 = vmatmul.mubr.bf16.gmra.mrb[0].mxu0 %v322
    %v643 = vpop.f32.mrb[0].mxu0
    %v644 = vadd.f32 %v608, %v643
    %v645 = vpop.f32.mrb[0].mxu0
    %v646 = vpop.f32.mrb[0].mxu0
    %v647 = vadd.f32 %v608, %v646
    %v648 = vpop.f32.mrb[0].mxu0
    %649 = vmatprep.mubr.bf16.mxu0 0
    %650 = vmatmul.mubr.bf16.gmra.mrb[0].mxu0 %v323
    %v651 = vpop.f32.mrb[0].mxu0
    %v652 = vadd.f32 %v608, %v651
    %v653 = vpop.f32.mrb[0].mxu0
    %v654 = vpop.f32.mrb[0].mxu0
    %v655 = vadd.f32 %v608, %v654
    %v656 = vpop.f32.mrb[0].mxu0
    %657 = vmatprep.mubr.bf16.mxu0 0
    %658 = vmatmul.mubr.bf16.gmra.mrb[0].mxu0 %v324
    %v659 = vpop.f32.mrb[0].mxu0
    %v660 = vadd.f32 %v608, %v659
    %v661 = vpop.f32.mrb[0].mxu0
    %v662 = vpop.f32.mrb[0].mxu0
    %v663 = vadd.f32 %v608, %v662
    %v664 = vpop.f32.mrb[0].mxu0
    %665 = vmatprep.mubr.bf16.mxu0 0
    %666 = vmatmul.mubr.bf16.gmra.mrb[0].mxu0 %v325
    %v667 = vpop.f32.mrb[0].mxu0
    %v668 = vadd.f32 %v608, %v667
    %v669 = vpop.f32.mrb[0].mxu0
    %v670 = vpop.f32.mrb[0].mxu0
    %v671 = vadd.f32 %v608, %v670
    %v672 = vpop.f32.mrb[0].mxu0
    %673 = vmatprep.mubr.bf16.mxu0 0
    %674 = vmatmul.mubr.bf16.gmra.mrb[0].mxu0 %v326
    %v675 = vpop.f32.mrb[0].mxu0
    %v676 = vadd.f32 %v608, %v675
    %v677 = vpop.f32.mrb[0].mxu0
    %v678 = vpop.f32.mrb[0].mxu0
    %v679 = vadd.f32 %v608, %v678
    %v680 = vpop.f32.mrb[0].mxu0
    %681 = vmatprep.mubr.bf16.mxu0 0
    %682 = vmatmul.mubr.bf16.gmra.mrb[0].mxu0 %v327
    %v683 = vpop.f32.mrb[0].mxu0
    %v684 = vadd.f32 %v608, %v683
    %v685 = vpop.f32.mrb[0].mxu0
    %v686 = vpop.f32.mrb[0].mxu0
    %v687 = vadd.f32 %v608, %v686
    %v688 = vpop.f32.mrb[0].mxu0
    %689 = vmatprep.mubr.bf16.mxu0 0
    %690 = vmatmul.mubr.bf16.gmra.mrb[0].mxu0 %v328
    %v691 = vpop.f32.mrb[0].mxu0
    %v692 = vadd.f32 %v608, %v691
    %v693 = vpop.f32.mrb[0].mxu0
    %v694 = vpop.f32.mrb[0].mxu0
    %v695 = vadd.f32 %v608, %v694
    %v696 = vpop.f32.mrb[0].mxu0
    %697 = vmatprep.mubr.bf16.mxu0 0
    %698 = vmatmul.mubr.bf16.gmra.mrb[0].mxu0 %v329
    %v699 = vpop.f32.mrb[0].mxu0
    %v700 = vadd.f32 %v608, %v699
    %v701 = vpop.f32.mrb[0].mxu0
    %v702 = vpop.f32.mrb[0].mxu0
    %v703 = vadd.f32 %v608, %v702
    %v704 = vpop.f32.mrb[0].mxu0
    %705 = vdwg.mxu0
    %v706 = vmax.f32 %v644, 0.0
    %v707 = vmax.f32 %v647, 0.0
    %v708 = vmax.f32 %v652, 0.0
    %v709 = vmax.f32 %v655, 0.0
    %v710 = vmax.f32 %v660, 0.0
    %v711 = vmax.f32 %v663, 0.0
    %v712 = vmax.f32 %v668, 0.0
    %v713 = vmax.f32 %v671, 0.0
    %v714 = vmax.f32 %v676, 0.0
    %v715 = vmax.f32 %v679, 0.0
    %v716 = vmax.f32 %v684, 0.0
    %v717 = vmax.f32 %v687, 0.0
    %v718 = vmax.f32 %v692, 0.0
    %v719 = vmax.f32 %v695, 0.0
    %v720 = vmax.f32 %v700, 0.0
    %v721 = vmax.f32 %v703, 0.0
    %v722 = vpack.c.bf16 %v707, %v706
    %v723 = vpack.c.bf16 %v709, %v708
    %v724 = vpack.c.bf16 %v711, %v710
    %v725 = vpack.c.bf16 %v713, %v712
    %v726 = vpack.c.bf16 %v715, %v714
    %v727 = vpack.c.bf16 %v717, %v716
    %v728 = vpack.c.bf16 %v719, %v718
    %v729 = vpack.c.bf16 %v721, %v720
    %s730 = scalar_lea.vmem [#allocation5], 16
    %v731 = vld [vmem:[%s730] sm:$0xf]
    %v732 = vld [vmem:[%s730 + $0x4] sm:$0xf]
    %v733 = vld [vmem:[%s730 + $0x8] sm:$0xf]
    %v734 = vld [vmem:[%s730 + $0xc] sm:$0xf]
    %v739 = vunpack.c.l.b16 %v731
    %v740 = vunpack.c.l.b16 %v732
    %v741 = vunpack.c.l.b16 %v733
    %v742 = vunpack.c.l.b16 %v734
    %v743 = vpack.c.b16 %v740, %v739
    %v744 = vpack.c.b16 %v742, %v741
    %v748 = vsel %vm155, %v722, 0
    %v751 = vsel %vm155, %v723, 0
    %v754 = vsel %vm155, %v724, 0
    %v757 = vsel %vm155, %v725, 0
    %v760 = vsel %vm155, %v726, 0
    %v763 = vsel %vm155, %v727, 0
    %v766 = vsel %vm155, %v728, 0
    %v769 = vsel %vm155, %v729, 0
    %771 = vmatprep.subr.bf16.mxu0 0
    %772 = vmatpush1.bf16.msra.mxu0 %v743
    %773 = vmatprep.subr.bf16.mxu0 0
    %774 = vmatpush1.bf16.msra.mxu0 %v744
    %775 = vmatprep.subr.bf16.mxu0 0
    %776 = vmatpush1.bf16.msra.mxu0 0
    %777 = vmatprep.subr.bf16.mxu0 0
    %778 = vmatpush1.bf16.msra.mxu0 0
    %779 = vmatprep.subr.bf16.mxu0 0
    %780 = vmatpush1.bf16.msra.mxu0 0
    %781 = vmatprep.subr.bf16.mxu0 0
    %782 = vmatpush1.bf16.msra.mxu0 0
    %783 = vmatprep.subr.bf16.mxu0 0
    %784 = vmatpush1.bf16.msra.mxu0 0
    %785 = vmatprep.subr.bf16.mxu0 0
    %786 = vmatpush1.bf16.msra.mxu0 0
    %787 = vmatprep.subr.bf16.mxu0 0
    %788 = vmatpush1.bf16.msra.mxu0 0
    %789 = vmatprep.subr.bf16.mxu0 0
    %790 = vmatpush1.bf16.msra.mxu0 0
    %791 = vmatprep.subr.bf16.mxu0 0
    %792 = vmatpush1.bf16.msra.mxu0 0
    %793 = vmatprep.subr.bf16.mxu0 0
    %794 = vmatpush1.bf16.msra.mxu0 0
    %795 = vmatprep.subr.bf16.mxu0 0
    %796 = vmatpush1.bf16.msra.mxu0 0
    %797 = vmatprep.subr.bf16.mxu0 0
    %798 = vmatpush1.bf16.msra.mxu0 0
    %799 = vmatprep.subr.bf16.mxu0 0
    %800 = vmatpush1.bf16.msra.mxu0 0
    %801 = vmatprep.subr.bf16.mxu0 0
    %802 = vmatpush1.bf16.msra.mxu0 0
    %803 = vmatprep.mubr.bf16.mxu0 0
    %804 = vmatmul.mubr.bf16.gmra.mrb[0].mxu0 %v748
    %v805 = vpop.f32.mrb[0].mxu0
    %v806 = vadd.f32 0.0, %v805
    %v807 = vpop.f32.mrb[0].mxu0
    %v808 = vpop.f32.mrb[0].mxu0
    %v809 = vadd.f32 0.0, %v808
    %v810 = vpop.f32.mrb[0].mxu0
    %811 = vmatprep.mubr.bf16.mxu0 0
    %812 = vmatmul.mubr.bf16.gmra.mrb[0].mxu0 %v751
    %v813 = vpop.f32.mrb[0].mxu0
    %v814 = vadd.f32 0.0, %v813
    %v815 = vpop.f32.mrb[0].mxu0
    %v816 = vpop.f32.mrb[0].mxu0
    %v817 = vadd.f32 0.0, %v816
    %v818 = vpop.f32.mrb[0].mxu0
    %819 = vmatprep.mubr.bf16.mxu0 0
    %820 = vmatmul.mubr.bf16.gmra.mrb[0].mxu0 %v754
    %v821 = vpop.f32.mrb[0].mxu0
    %v822 = vadd.f32 0.0, %v821
    %v823 = vpop.f32.mrb[0].mxu0
    %v824 = vpop.f32.mrb[0].mxu0
    %v825 = vadd.f32 0.0, %v824
    %v826 = vpop.f32.mrb[0].mxu0
    %827 = vmatprep.mubr.bf16.mxu0 0
    %828 = vmatmul.mubr.bf16.gmra.mrb[0].mxu0 %v757
    %v829 = vpop.f32.mrb[0].mxu0
    %v830 = vadd.f32 0.0, %v829
    %v831 = vpop.f32.mrb[0].mxu0
    %v832 = vpop.f32.mrb[0].mxu0
    %v833 = vadd.f32 0.0, %v832
    %v834 = vpop.f32.mrb[0].mxu0
    %835 = vmatprep.mubr.bf16.mxu0 0
    %836 = vmatmul.mubr.bf16.gmra.mrb[0].mxu0 %v760
    %v837 = vpop.f32.mrb[0].mxu0
    %v838 = vadd.f32 0.0, %v837
    %v839 = vpop.f32.mrb[0].mxu0
    %v840 = vpop.f32.mrb[0].mxu0
    %v841 = vadd.f32 0.0, %v840
    %v842 = vpop.f32.mrb[0].mxu0
    %843 = vmatprep.mubr.bf16.mxu0 0
    %844 = vmatmul.mubr.bf16.gmra.mrb[0].mxu0 %v763
    %v845 = vpop.f32.mrb[0].mxu0
    %v846 = vadd.f32 0.0, %v845
    %v847 = vpop.f32.mrb[0].mxu0
    %v848 = vpop.f32.mrb[0].mxu0
    %v849 = vadd.f32 0.0, %v848
    %v850 = vpop.f32.mrb[0].mxu0
    %851 = vmatprep.mubr.bf16.mxu0 0
    %852 = vmatmul.mubr.bf16.gmra.mrb[0].mxu0 %v766
    %v853 = vpop.f32.mrb[0].mxu0
    %v854 = vadd.f32 0.0, %v853
    %v855 = vpop.f32.mrb[0].mxu0
    %v856 = vpop.f32.mrb[0].mxu0
    %v857 = vadd.f32 0.0, %v856
    %v858 = vpop.f32.mrb[0].mxu0
    %859 = vmatprep.mubr.bf16.mxu0 0
    %860 = vmatmul.mubr.bf16.gmra.mrb[0].mxu0 %v769
    %v861 = vpop.f32.mrb[0].mxu0
    %v862 = vadd.f32 0.0, %v861
    %v863 = vpop.f32.mrb[0].mxu0
    %v864 = vpop.f32.mrb[0].mxu0
    %v865 = vadd.f32 0.0, %v864
    %v866 = vpop.f32.mrb[0].mxu0
    %867 = vdwg.mxu0
    %v868 = vpack.c.bf16 %v809, %v806
    %v869 = vpack.c.bf16 %v817, %v814
    %v870 = vpack.c.bf16 %v825, %v822
    %v871 = vpack.c.bf16 %v833, %v830
    %v872 = vpack.c.bf16 %v841, %v838
    %v873 = vpack.c.bf16 %v849, %v846
    %v874 = vpack.c.bf16 %v857, %v854
    %v875 = vpack.c.bf16 %v865, %v862
    %v876 = vld [vmem:[#allocation7 + $0x2] sm:$0x1]
    %v877 = vlaneseq
    %v878 = vshrl.u32 %v877, 7
    %v879 = vsub.s32 0, %v878
    %v880 = vrot.slane %v876, %v879
    %881 = vmatprep.subr.bf16.mxu0 0
    %882 = vmatpush1.bf16.msra.mxu0 %v868
    %883 = vmatprep.subr.bf16.mxu0 0
    %884 = vmatpush1.bf16.msra.mxu0 %v869
    %885 = vmatprep.subr.bf16.mxu0 0
    %886 = vmatpush1.bf16.msra.mxu0 %v870
    %887 = vmatprep.subr.bf16.mxu0 0
    %888 = vmatpush1.bf16.msra.mxu0 %v871
    %889 = vmatprep.subr.bf16.mxu0 0
    %890 = vmatpush1.bf16.msra.mxu0 %v872
    %891 = vmatprep.subr.bf16.mxu0 0
    %892 = vmatpush1.bf16.msra.mxu0 %v873
    %893 = vmatprep.subr.bf16.mxu0 0
    %894 = vmatpush1.bf16.msra.mxu0 %v874
    %895 = vmatprep.subr.bf16.mxu0 0
    %896 = vmatpush1.bf16.msra.mxu0 %v875
    %897 = vmatprep.subr.bf16.mxu0 0
    %898 = vmatpush1.bf16.msra.mxu0 0
    %899 = vmatprep.subr.bf16.mxu0 0
    %900 = vmatpush1.bf16.msra.mxu0 0
    %901 = vmatprep.subr.bf16.mxu0 0
    %902 = vmatpush1.bf16.msra.mxu0 0
    %903 = vmatprep.subr.bf16.mxu0 0
    %904 = vmatpush1.bf16.msra.mxu0 0
    %905 = vmatprep.subr.bf16.mxu0 0
    %906 = vmatpush1.bf16.msra.mxu0 0
    %907 = vmatprep.subr.bf16.mxu0 0
    %908 = vmatpush1.bf16.msra.mxu0 0
    %909 = vmatprep.subr.bf16.mxu0 0
    %910 = vmatpush1.bf16.msra.mxu0 0
    %911 = vmatprep.subr.bf16.mxu0 0
    %912 = vmatpush1.bf16.msra.mxu0 0
    %913 = vmatprep.mubr.bf16.mxu0 0
    %914 = vmatmul.mubr.bf16.gmra.mrb[0].mxu0 %v322
    %v915 = vpop.f32.mrb[0].mxu0
    %v916 = vadd.f32 %v880, %v915
    %v917 = vpop.f32.mrb[0].mxu0
    %v918 = vpop.f32.mrb[0].mxu0
    %v919 = vadd.f32 %v880, %v918
    %v920 = vpop.f32.mrb[0].mxu0
    %921 = vmatprep.mubr.bf16.mxu0 0
    %922 = vmatmul.mubr.bf16.gmra.mrb[0].mxu0 %v323
    %v923 = vpop.f32.mrb[0].mxu0
    %v924 = vadd.f32 %v880, %v923
    %v925 = vpop.f32.mrb[0].mxu0
    %v926 = vpop.f32.mrb[0].mxu0
    %v927 = vadd.f32 %v880, %v926
    %v928 = vpop.f32.mrb[0].mxu0
    %929 = vmatprep.mubr.bf16.mxu0 0
    %930 = vmatmul.mubr.bf16.gmra.mrb[0].mxu0 %v324
    %v931 = vpop.f32.mrb[0].mxu0
    %v932 = vadd.f32 %v880, %v931
    %v933 = vpop.f32.mrb[0].mxu0
    %v934 = vpop.f32.mrb[0].mxu0
    %v935 = vadd.f32 %v880, %v934
    %v936 = vpop.f32.mrb[0].mxu0
    %937 = vmatprep.mubr.bf16.mxu0 0
    %938 = vmatmul.mubr.bf16.gmra.mrb[0].mxu0 %v325
    %v939 = vpop.f32.mrb[0].mxu0
    %v940 = vadd.f32 %v880, %v939
    %v941 = vpop.f32.mrb[0].mxu0
    %v942 = vpop.f32.mrb[0].mxu0
    %v943 = vadd.f32 %v880, %v942
    %v944 = vpop.f32.mrb[0].mxu0
    %945 = vmatprep.mubr.bf16.mxu0 0
    %946 = vmatmul.mubr.bf16.gmra.mrb[0].mxu0 %v326
    %v947 = vpop.f32.mrb[0].mxu0
    %v948 = vadd.f32 %v880, %v947
    %v949 = vpop.f32.mrb[0].mxu0
    %v950 = vpop.f32.mrb[0].mxu0
    %v951 = vadd.f32 %v880, %v950
    %v952 = vpop.f32.mrb[0].mxu0
    %953 = vmatprep.mubr.bf16.mxu0 0
    %954 = vmatmul.mubr.bf16.gmra.mrb[0].mxu0 %v327
    %v955 = vpop.f32.mrb[0].mxu0
    %v956 = vadd.f32 %v880, %v955
    %v957 = vpop.f32.mrb[0].mxu0
    %v958 = vpop.f32.mrb[0].mxu0
    %v959 = vadd.f32 %v880, %v958
    %v960 = vpop.f32.mrb[0].mxu0
    %961 = vmatprep.mubr.bf16.mxu0 0
    %962 = vmatmul.mubr.bf16.gmra.mrb[0].mxu0 %v328
    %v963 = vpop.f32.mrb[0].mxu0
    %v964 = vadd.f32 %v880, %v963
    %v965 = vpop.f32.mrb[0].mxu0
    %v966 = vpop.f32.mrb[0].mxu0
    %v967 = vadd.f32 %v880, %v966
    %v968 = vpop.f32.mrb[0].mxu0
    %969 = vmatprep.mubr.bf16.mxu0 0
    %970 = vmatmul.mubr.bf16.gmra.mrb[0].mxu0 %v329
    %v971 = vpop.f32.mrb[0].mxu0
    %v972 = vadd.f32 %v880, %v971
    %v973 = vpop.f32.mrb[0].mxu0
    %v974 = vpop.f32.mrb[0].mxu0
    %v975 = vadd.f32 %v880, %v974
    %v976 = vpop.f32.mrb[0].mxu0
    %977 = vdwg.mxu0
    %v978 = vmax.f32 %v916, 0.0
    %v979 = vmax.f32 %v919, 0.0
    %v980 = vmax.f32 %v924, 0.0
    %v981 = vmax.f32 %v927, 0.0
    %v982 = vmax.f32 %v932, 0.0
    %v983 = vmax.f32 %v935, 0.0
    %v984 = vmax.f32 %v940, 0.0
    %v985 = vmax.f32 %v943, 0.0
    %v986 = vmax.f32 %v948, 0.0
    %v987 = vmax.f32 %v951, 0.0
    %v988 = vmax.f32 %v956, 0.0
    %v989 = vmax.f32 %v959, 0.0
    %v990 = vmax.f32 %v964, 0.0
    %v991 = vmax.f32 %v967, 0.0
    %v992 = vmax.f32 %v972, 0.0
    %v993 = vmax.f32 %v975, 0.0
    %v994 = vpack.c.bf16 %v979, %v978
    %v995 = vpack.c.bf16 %v981, %v980
    %v996 = vpack.c.bf16 %v983, %v982
    %v997 = vpack.c.bf16 %v985, %v984
    %v998 = vpack.c.bf16 %v987, %v986
    %v999 = vpack.c.bf16 %v989, %v988
    %v1000 = vpack.c.bf16 %v991, %v990
    %v1001 = vpack.c.bf16 %v993, %v992
    %v1002 = vld [vmem:[#allocation2] sm:$0xf]
    %v1003 = vld [vmem:[#allocation2 + $0x4] sm:$0xf]
    %v1006 = vunpack.c.l.b16 %v1002
    %v1007 = vunpack.c.l.b16 %v1003
    %v1008 = vpack.c.b16 %v1007, %v1006
    %1010 = vmatprep.subr.bf16.mxu0 0
    %1011 = vmatpush1.bf16.msra.mxu0 %v994
    %1012 = vmatprep.subr.bf16.mxu0 0
    %1013 = vmatpush1.bf16.msra.mxu0 %v995
    %1014 = vmatprep.subr.bf16.mxu0 0
    %1015 = vmatpush1.bf16.msra.mxu0 %v996
    %1016 = vmatprep.subr.bf16.mxu0 0
    %1017 = vmatpush1.bf16.msra.mxu0 %v997
    %1018 = vmatprep.subr.bf16.mxu0 0
    %1019 = vmatpush1.bf16.msra.mxu0 %v998
    %1020 = vmatprep.subr.bf16.mxu0 0
    %1021 = vmatpush1.bf16.msra.mxu0 %v999
    %1022 = vmatprep.subr.bf16.mxu0 0
    %1023 = vmatpush1.bf16.msra.mxu0 %v1000
    %1024 = vmatprep.subr.bf16.mxu0 0
    %1025 = vmatpush1.bf16.msra.mxu0 %v1001
    %1026 = vmatprep.subr.bf16.mxu0 0
    %1027 = vmatpush1.bf16.msra.mxu0 0
    %1028 = vmatprep.subr.bf16.mxu0 0
    %1029 = vmatpush1.bf16.msra.mxu0 0
    %1030 = vmatprep.subr.bf16.mxu0 0
    %1031 = vmatpush1.bf16.msra.mxu0 0
    %1032 = vmatprep.subr.bf16.mxu0 0
    %1033 = vmatpush1.bf16.msra.mxu0 0
    %1034 = vmatprep.subr.bf16.mxu0 0
    %1035 = vmatpush1.bf16.msra.mxu0 0
    %1036 = vmatprep.subr.bf16.mxu0 0
    %1037 = vmatpush1.bf16.msra.mxu0 0
    %1038 = vmatprep.subr.bf16.mxu0 0
    %1039 = vmatpush1.bf16.msra.mxu0 0
    %1040 = vmatprep.subr.bf16.mxu0 0
    %1041 = vmatpush1.bf16.msra.mxu0 0
    %1042 = vmatprep.mubr.bf16.mxu0 0
    %1043 = vmatmul.mubr.bf16.gmra.mrb[0].mxu0 %v1008
    %v1044 = vpop.f32.mrb[0].mxu0
    %v1045 = vadd.f32 0.0, %v1044
    %v1046 = vpop.f32.mrb[0].mxu0
    %v1047 = vpop.f32.mrb[0].mxu0
    %v1048 = vadd.f32 0.0, %v1047
    %v1049 = vpop.f32.mrb[0].mxu0
    %1050 = vdwg.mxu0
    %v1051 = vpack.c.bf16 %v1048, %v1045
    %s1052 = scalar_lea.vmem [#allocation5], 32
    %v1053 = vld [vmem:[%s1052] sm:$0xf]
    %v1054 = vld [vmem:[%s1052 + $0x4] sm:$0xf]
    %v1055 = vld [vmem:[%s1052 + $0x8] sm:$0xf]
    %v1056 = vld [vmem:[%s1052 + $0xc] sm:$0xf]
    %v1057 = vld [vmem:[#allocation7 + $0x3] sm:$0x1]
    %v1058 = vlaneseq
    %v1059 = vshrl.u32 %v1058, 7
    %v1060 = vsub.s32 0, %v1059
    %v1061 = vrot.slane %v1057, %v1060
    %v1066 = vunpack.c.l.b16 %v1053
    %v1067 = vunpack.c.l.b16 %v1054
    %v1068 = vunpack.c.l.b16 %v1055
    %v1069 = vunpack.c.l.b16 %v1056
    %v1070 = vpack.c.b16 %v1067, %v1066
    %v1071 = vpack.c.b16 %v1069, %v1068
    %v1075 = vsel %vm155, %v1051, 0
    %1077 = vmatprep.subr.bf16.mxu0 0
    %1078 = vmatpush1.bf16.msra.mxu0 %v1070
    %1079 = vmatprep.subr.bf16.mxu0 0
    %1080 = vmatpush1.bf16.msra.mxu0 %v1071
    %1081 = vmatprep.subr.bf16.mxu0 0
    %1082 = vmatpush1.bf16.msra.mxu0 0
    %1083 = vmatprep.subr.bf16.mxu0 0
    %1084 = vmatpush1.bf16.msra.mxu0 0
    %1085 = vmatprep.subr.bf16.mxu0 0
    %1086 = vmatpush1.bf16.msra.mxu0 0
    %1087 = vmatprep.subr.bf16.mxu0 0
    %1088 = vmatpush1.bf16.msra.mxu0 0
    %1089 = vmatprep.subr.bf16.mxu0 0
    %1090 = vmatpush1.bf16.msra.mxu0 0
    %1091 = vmatprep.subr.bf16.mxu0 0
    %1092 = vmatpush1.bf16.msra.mxu0 0
    %1093 = vmatprep.subr.bf16.mxu0 0
    %1094 = vmatpush1.bf16.msra.mxu0 0
    %1095 = vmatprep.subr.bf16.mxu0 0
    %1096 = vmatpush1.bf16.msra.mxu0 0
    %1097 = vmatprep.subr.bf16.mxu0 0
    %1098 = vmatpush1.bf16.msra.mxu0 0
    %1099 = vmatprep.subr.bf16.mxu0 0
    %1100 = vmatpush1.bf16.msra.mxu0 0
    %1101 = vmatprep.subr.bf16.mxu0 0
    %1102 = vmatpush1.bf16.msra.mxu0 0
    %1103 = vmatprep.subr.bf16.mxu0 0
    %1104 = vmatpush1.bf16.msra.mxu0 0
    %1105 = vmatprep.subr.bf16.mxu0 0
    %1106 = vmatpush1.bf16.msra.mxu0 0
    %1107 = vmatprep.subr.bf16.mxu0 0
    %1108 = vmatpush1.bf16.msra.mxu0 0
    %1109 = vmatprep.mubr.bf16.mxu0 0
    %1110 = vmatmul.mubr.bf16.gmra.mrb[0].mxu0 %v1075
    %v1111 = vpop.f32.mrb[0].mxu0
    %v1112 = vadd.f32 %v1061, %v1111
    %v1113 = vpop.f32.mrb[0].mxu0
    %v1114 = vpop.f32.mrb[0].mxu0
    %v1115 = vadd.f32 %v1061, %v1114
    %v1116 = vpop.f32.mrb[0].mxu0
    %1117 = vdwg.mxu0
    %v1118 = vmax.f32 %v1112, 0.0
    %v1119 = vmax.f32 %v1115, 0.0
    %v1120 = vpack.c.bf16 %v1119, %v1118
    %v1121 = vld [vmem:[%s5] sm:$0xf]
    %v1122 = vld [vmem:[%s5 + $0x4] sm:$0xf]
    %v1123 = vld [vmem:[%s5 + $0x8] sm:$0xf]
    %v1124 = vld [vmem:[%s5 + $0xc] sm:$0xf]
    %v1125 = vld [vmem:[#allocation7 + $0x4] sm:$0x1]
    %v1126 = vlaneseq
    %v1127 = vshrl.u32 %v1126, 7
    %v1128 = vsub.s32 0, %v1127
    %v1129 = vrot.slane %v1125, %v1128
    %v1134 = vunpack.c.l.b16 %v1121
    %v1135 = vunpack.c.l.b16 %v1122
    %v1136 = vunpack.c.l.b16 %v1123
    %v1137 = vunpack.c.l.b16 %v1124
    %v1138 = vpack.c.b16 %v1135, %v1134
    %v1139 = vpack.c.b16 %v1137, %v1136
    %v1143 = vsel %vm155, %v1120, 0
    %1145 = vmatprep.subr.bf16.mxu0 0
    %1146 = vmatpush1.bf16.msra.mxu0 %v1138
    %1147 = vmatprep.subr.bf16.mxu0 0
    %1148 = vmatpush1.bf16.msra.mxu0 %v1139
    %1149 = vmatprep.subr.bf16.mxu0 0
    %1150 = vmatpush1.bf16.msra.mxu0 0
    %1151 = vmatprep.subr.bf16.mxu0 0
    %1152 = vmatpush1.bf16.msra.mxu0 0
    %1153 = vmatprep.subr.bf16.mxu0 0
    %1154 = vmatpush1.bf16.msra.mxu0 0
    %1155 = vmatprep.subr.bf16.mxu0 0
    %1156 = vmatpush1.bf16.msra.mxu0 0
    %1157 = vmatprep.subr.bf16.mxu0 0
    %1158 = vmatpush1.bf16.msra.mxu0 0
    %1159 = vmatprep.subr.bf16.mxu0 0
    %1160 = vmatpush1.bf16.msra.mxu0 0
    %1161 = vmatprep.subr.bf16.mxu0 0
    %1162 = vmatpush1.bf16.msra.mxu0 0
    %1163 = vmatprep.subr.bf16.mxu0 0
    %1164 = vmatpush1.bf16.msra.mxu0 0
    %1165 = vmatprep.subr.bf16.mxu0 0
    %1166 = vmatpush1.bf16.msra.mxu0 0
    %1167 = vmatprep.subr.bf16.mxu0 0
    %1168 = vmatpush1.bf16.msra.mxu0 0
    %1169 = vmatprep.subr.bf16.mxu0 0
    %1170 = vmatpush1.bf16.msra.mxu0 0
    %1171 = vmatprep.subr.bf16.mxu0 0
    %1172 = vmatpush1.bf16.msra.mxu0 0
    %1173 = vmatprep.subr.bf16.mxu0 0
    %1174 = vmatpush1.bf16.msra.mxu0 0
    %1175 = vmatprep.subr.bf16.mxu0 0
    %1176 = vmatpush1.bf16.msra.mxu0 0
    %1177 = vmatprep.mubr.bf16.mxu0 0
    %1178 = vmatmul.mubr.bf16.gmra.mrb[0].mxu0 %v1143
    %v1179 = vpop.f32.mrb[0].mxu0
    %v1180 = vadd.f32 %v1129, %v1179
    %v1181 = vpop.f32.mrb[0].mxu0
    %v1182 = vpop.f32.mrb[0].mxu0
    %v1183 = vadd.f32 %v1129, %v1182
    %v1184 = vpop.f32.mrb[0].mxu0
    %1185 = vdwg.mxu0
    %1186 = vst [vmem:[#allocation8] sm:$0xff] %v1180
    %1187 = vst [vmem:[#allocation8 + $0x8] sm:$0xff] %v1183
    // Predicated region
    $region42: #{tpu_custom_call.1} parent=1 // pred_check
      _
    $region43: #{tpu_custom_call.1} parent=1 // pred_check_branch
      %1189 = sbr.rel (0) target = $region45
    $region44: #{tpu_custom_call.1} parent=1 // pred_region
      %s1191 = ssub.s32 256, 256
      %1192 = vsyncadd [#allocation4], %s1191
      %s1193 = sshll.u32 [#allocation8], 4
      %s1194 = int_to_ptr.vmem [resolvable:$true] %s1193
      %1199 = dma.vmem_to_hbm [thread:$0]  %s1194, 256, %s7, [#allocation4], 128, 128, 8
    $region45: #{tpu_custom_call.1} parent=1 // pred_fallthru
      _
    // Predicated region
    $region46: #{tpu_custom_call.1} parent=1 // pred_check
      _
    $region47: #{tpu_custom_call.1} parent=1 // pred_check_branch
      %1201 = sbr.rel (0) target = $region49
    $region48: #{tpu_custom_call.1} parent=1 // pred_region
      %1202 = dma.done [#allocation4], 256
    $region49: #{tpu_custom_call.1} parent=1 // pred_fallthru
      _
    %1203 = vsyncpa [#allocation3], 1
    %1204 = vsyncpa [#allocation6], 1
    %1205 = vsyncpa [#allocation4], 1

</llo_original>
